<compile_context>
chip_gen: v7x
topology: tpu7x:2x2x1
jax: 0.10.0
libtpu: 0.0.40
codegen_flags: <defaults>
</compile_context>

<pallas_src>
import functools

import jax
import jax.numpy as jnp
import numpy as np
from jax import lax
from jax.experimental import pallas as pl
from jax.experimental.pallas import tpu as pltpu


# ----------------------------------------------------------------------------
# Helpers
# ----------------------------------------------------------------------------
def _round_up(n, m):
    return (n + m - 1) // m * m


def _rollout_coeffs(seq_len, dt, omega, gamma):
    """Closed-form coefficients for the order-2 damped-oscillation recurrence.

    zphys[t] = alpha[t] * z[1] + beta[t] * z[0], computed at trace time in
    float64 so the kernel needs no serial dependency chain.
    """
    c_cur = 2.0 - dt * dt * omega * omega - 2.0 * gamma * dt
    c_prev = -1.0 + 2.0 * gamma * dt
    a = [0.0, 1.0]
    b = [1.0, 0.0]
    for _ in range(2, seq_len):
        a.append(c_cur * a[-1] + c_prev * a[-2])
        b.append(c_cur * b[-1] + c_prev * b[-2])
    a = [float(np.float64(v)) for v in a[:seq_len]]
    b = [float(np.float64(v)) for v in b[:seq_len]]
    return float(c_cur), float(c_prev), tuple(a), tuple(b)


def _pick_batch_tile(batch, seq_len, dp, hp, lp, budget_bytes=12 << 20):
    """Pick TB (batches per grid step) so the tile fits the smallest default
    scoped-VMEM window (v5e 16 MiB; v6e/v7x 32 MiB) with double buffering."""

    def tile_bytes(tb):
        rows = tb * seq_len
        x_bytes = 2 * rows * dp * 2                    # double-buffered bf16 x
        out_bytes = 3 * 2 * tb * seq_len * lp * 4      # 3 double-buffered f32 outs
        w_bytes = (dp * hp + hp * hp + hp * lp) * 2 + (2 * hp + lp) * 4
        coef_bytes = 2 * seq_len * lp * 4
        inter = 2 * rows * hp * 4                      # h1/h2 intermediates
        return x_bytes + out_bytes + w_bytes + coef_bytes + inter

    target_rows = 512
    tb = max(1, min(batch, max(1, target_rows // max(seq_len, 1))))
    while tb > 1 and (batch % tb != 0 or tile_bytes(tb) > budget_bytes):
        tb -= 1
    # The x block's sublane dim (TB*T) must be a multiple of 8 or the full
    # extent; fall back to a single full-extent block if not.
    if (tb * seq_len) % 8 != 0 and tb != batch:
        tb = batch
    return tb


def _pad_and_cast_params(enc_params):
    """Zero-pad all MLP widths up to multiples of 128 (lane-dense matmuls and
    stores); weights cast to bf16 (f32 accumulation in-kernel), biases f32."""
    w1, b1, w2, b2, w3, b3 = enc_params
    din, hidden = w1.shape
    latent = w3.shape[1]
    dp = _round_up(din, 128)
    hp = _round_up(hidden, 128)
    lp = _round_up(latent, 128)

    def pad2(a, r, c):
        return jnp.pad(a.astype(jnp.float32),
                       ((0, r - a.shape[0]), (0, c - a.shape[1])))

    w1p = pad2(w1, dp, hp).astype(jnp.bfloat16)
    w2p = pad2(w2, hp, hp).astype(jnp.bfloat16)
    w3p = pad2(w3, hp, lp).astype(jnp.bfloat16)
    b1p = pad2(b1, 1, hp)
    b2p = pad2(b2, 1, hp)
    b3p = pad2(b3, 1, lp)
    return (w1p, b1p, w2p, b2p, w3p, b3p), (dp, hp, lp)


# ----------------------------------------------------------------------------
# Fused encoder + physics kernel
# ----------------------------------------------------------------------------
def _endphys_kernel(x_ref, w1_ref, b1_ref, w2_ref, b2_ref, w3_ref, b3_ref,
                    alpha_ref, beta_ref,
                    zenc_ref, zphys_ref, zren_ref, *,
                    batch_tile, seq_len, c_cur, c_prev):
    # ---- Encoder MLP: bf16 MXU matmuls with f32 accumulation, f32 bias/ReLU.
    h1 = jnp.dot(x_ref[...], w1_ref[...], preferred_element_type=jnp.float32)
    h1 = jnp.maximum(h1 + b1_ref[...], 0.0).astype(x_ref.dtype)
    h2 = jnp.dot(h1, w2_ref[...], preferred_element_type=jnp.float32)
    h2 = jnp.maximum(h2 + b2_ref[...], 0.0).astype(x_ref.dtype)
    z = jnp.dot(h2, w3_ref[...], preferred_element_type=jnp.float32) + b3_ref[...]

    lp = z.shape[-1]
    zr = z.reshape(batch_tile, seq_len, lp)           # (TB, T, Lp), f32
    zenc_ref[...] = zr

    # ---- z2_phys (closed-loop rollout) via trace-time closed-form
    # coefficients: zphys[t] = alpha[t]*z[1] + beta[t]*z[0].
    # alpha/beta are lane-replicated (1, T, Lp) VMEM inputs, so this is one
    # broadcast FMA and one unmasked full-lane store (no serial chain).
    zphys_ref[...] = (alpha_ref[...] * zr[:, 1:2, :]
                      + beta_ref[...] * zr[:, 0:1, :])

    # ---- z_renorm (open-loop, one-step prediction from encoder latents):
    # full store of z, then one vectorized shifted FMA overwrites t >= 2.
    zren_ref[...] = zr
    if seq_len > 2:
        zren_ref[:, 2:, :] = (c_cur * zr[:, 1:seq_len - 1, :]
                              + c_prev * zr[:, 0:seq_len - 2, :])


def end_phys_forward(x, enc_params, *, dt, omega, gamma):
    """x: (B, T, C, H, W) -> (z2_encoder, z2_phys, z_renorm), each (B, T, L)."""
    B, T, C, H, W = x.shape
    assert T >= 2, "order=2 rollout needs at least 2 frames"
    din = C * H * W
    latent = enc_params[4].shape[1]                   # w3: (hidden, latent)

    (w1p, b1p, w2p, b2p, w3p, b3p), (dp, hp, lp) = _pad_and_cast_params(enc_params)

    x_flat = x.reshape(B * T, din).astype(jnp.float32)
    x_pad = jnp.pad(x_flat, ((0, 0), (0, dp - din))).astype(jnp.bfloat16)

    tb = _pick_batch_tile(B, T, dp, hp, lp)
    rows = tb * T
    c_cur, c_prev, alpha, beta = _rollout_coeffs(T, dt, omega, gamma)

    # Lane-replicated rollout coefficient planes, shape (1, T, Lp).
    alpha_arr = jnp.broadcast_to(
        jnp.asarray(alpha, jnp.float32)[None, :, None], (1, T, lp))
    beta_arr = jnp.broadcast_to(
        jnp.asarray(beta, jnp.float32)[None, :, None], (1, T, lp))

    kernel = functools.partial(
        _endphys_kernel, batch_tile=tb, seq_len=T, c_cur=c_cur, c_prev=c_prev)

    out_bspec = pl.BlockSpec((tb, T, lp), lambda i: (i, 0, 0))
    zenc, zphys, zren = pl.pallas_call(
        kernel,
        out_shape=(jax.ShapeDtypeStruct((B, T, lp), jnp.float32),
                   jax.ShapeDtypeStruct((B, T, lp), jnp.float32),
                   jax.ShapeDtypeStruct((B, T, lp), jnp.float32)),
        grid=(B // tb,),
        in_specs=[
            pl.BlockSpec((rows, dp), lambda i: (i, 0)),    # x tile (rows vary)
            pl.BlockSpec((dp, hp), lambda i: (0, 0)),      # weights stay resident
            pl.BlockSpec((1, hp), lambda i: (0, 0)),
            pl.BlockSpec((hp, hp), lambda i: (0, 0)),
            pl.BlockSpec((1, hp), lambda i: (0, 0)),
            pl.BlockSpec((hp, lp), lambda i: (0, 0)),
            pl.BlockSpec((1, lp), lambda i: (0, 0)),
            pl.BlockSpec((1, T, lp), lambda i: (0, 0, 0)),  # alpha
            pl.BlockSpec((1, T, lp), lambda i: (0, 0, 0)),  # beta
        ],
        out_specs=(out_bspec, out_bspec, out_bspec),
        compiler_params=pltpu.CompilerParams(
            dimension_semantics=("parallel",)),            # 2x TC on v7x
    )(x_pad, w1p, b1p, w2p, b2p, w3p, b3p, alpha_arr, beta_arr)

    # Slice the valid latent columns back out of the 128-padded outputs.
    return zenc[:, :, :latent], zphys[:, :, :latent], zren[:, :, :latent]


# ----------------------------------------------------------------------------
# Deterministic parameter init (PyTorch-Linear-style uniform fan-in init)
# ----------------------------------------------------------------------------
def init_encoder_params(key, in_dim, hidden, latent_dim):
    ks = jax.random.split(key, 6)

    def linear(kw, kb, fan_in, fan_out):
        bound = 1.0 / np.sqrt(fan_in)
        w = jax.random.uniform(kw, (fan_in, fan_out), jnp.float32, -bound, bound)
        b = jax.random.uniform(kb, (1, fan_out), jnp.float32, -bound, bound)
        return w, b

    w1, b1 = linear(ks[0], ks[1], in_dim, hidden)
    w2, b2 = linear(ks[2], ks[3], hidden, hidden)
    w3, b3 = linear(ks[4], ks[5], hidden, latent_dim)
    return (w1, b1, w2, b2, w3, b3)


# ----------------------------------------------------------------------------
# Pure-JAX reference (PyTorch-style step-by-step rollout)
#   quantize=True mirrors the kernel's bf16-operand / f32-accumulate matmuls
#   so the kernel logic can be checked with a tight tolerance.
# ----------------------------------------------------------------------------
def reference_forward(x, enc_params, *, dt, omega, gamma, quantize=False):
    w1, b1, w2, b2, w3, b3 = enc_params
    B, T, C, H, W = x.shape
    hi = lax.Precision.HIGHEST
    q = ((lambda a: a.astype(jnp.bfloat16).astype(jnp.float32))
         if quantize else (lambda a: a))

    xf = q(x.reshape(B * T, C * H * W).astype(jnp.float32))
    h1 = q(jnp.maximum(jnp.dot(xf, q(w1), precision=hi) + b1, 0.0))
    h2 = q(jnp.maximum(jnp.dot(h1, q(w2), precision=hi) + b2, 0.0))
    z = (jnp.dot(h2, q(w3), precision=hi) + b3).reshape(B, T, -1)

    order = 2
    c_cur = 2.0 - dt * dt * omega * omega - 2.0 * gamma * dt
    c_prev = -1.0 + 2.0 * gamma * dt
    z2_phys = z[:, 0:order, :]
    z_renorm = z[:, 0:order, :]
    for i in range(T - order):
        pw = (c_cur * z2_phys[:, i + 1:i + 2, :]
              + c_prev * z2_phys[:, i:i + 1, :])
        pw2 = c_cur * z[:, i + 1:i + 2, :] + c_prev * z[:, i:i + 1, :]
        z2_phys = jnp.concatenate((z2_phys, pw), axis=1)
        z_renorm = jnp.concatenate((z_renorm, pw2), axis=1)
    return z, z2_phys, z_renorm


if __name__ == "__main__":
    # Small shapes consistent with the module: a stack of T frames,
    # each (C, H, W) with H = W = in_size.
    B, T, C, H, W = 2, 8, 1, 16, 16
    latent_dim, hidden = 4, 32
    dt, omega, gamma = 0.2, 1.0, 0.1   # physics-model parameters

    key = jax.random.PRNGKey(0)
    k_x, k_p = jax.random.split(key)
    x = jax.random.normal(k_x, (B, T, C, H, W), dtype=jnp.float32)
    enc_params = init_encoder_params(k_p, C * H * W, hidden, latent_dim)

    fwd = jax.jit(functools.partial(end_phys_forward, dt=dt, omega=omega,
                                    gamma=gamma))
    outs = fwd(x, enc_params)
    jax.block_until_ready(outs)
    z2_encoder, z2_phys, z_renorm = outs

    # Tight check: reference with the same bf16 operand quantization as the
    # kernel (differences are only accumulation order / reassociation).
    ref_q = reference_forward(x, enc_params, dt=dt, omega=omega, gamma=gamma,
                              quantize=True)
    for got, want in zip(outs, ref_q):
        np.testing.assert_allclose(np.asarray(got), np.asarray(want),
                                   rtol=1e-3, atol=1e-3)

    # Coarse semantic sanity check against the full-f32 PyTorch-style
    # reference (bounds the intentional bf16 operand quantization).
    ref_f = reference_forward(x, enc_params, dt=dt, omega=omega, gamma=gamma,
                              quantize=False)
    for got, want in zip(outs, ref_f):
        np.testing.assert_allclose(np.asarray(got), np.asarray(want),
                                   rtol=5e-2, atol=1e-1)

    assert z2_encoder.shape == (B, T, latent_dim)
    assert z2_phys.shape == (B, T, latent_dim)
    assert z_renorm.shape == (B, T, latent_dim)
    print("KERNEL_OK")
</pallas_src>

<mosaic_0001>
module attributes {stable_mosaic.version = 11 : i64} {
  func.func @_endphys_kernel(%arg0: i32, %arg1: memref<16x256xbf16, #tpu.memory_space<vmem>>, %arg2: memref<256x128xbf16, #tpu.memory_space<vmem>>, %arg3: memref<1x128xf32, #tpu.memory_space<vmem>>, %arg4: memref<128x128xbf16, #tpu.memory_space<vmem>>, %arg5: memref<1x128xf32, #tpu.memory_space<vmem>>, %arg6: memref<128x128xbf16, #tpu.memory_space<vmem>>, %arg7: memref<1x128xf32, #tpu.memory_space<vmem>>, %arg8: memref<1x8x128xf32, #tpu.memory_space<vmem>>, %arg9: memref<1x8x128xf32, #tpu.memory_space<vmem>>, %arg10: memref<2x8x128xf32, #tpu.memory_space<vmem>>, %arg11: memref<2x8x128xf32, #tpu.memory_space<vmem>>, %arg12: memref<2x8x128xf32, #tpu.memory_space<vmem>>) attributes {dimension_semantics = [#tpu.dimension_semantics<parallel>], iteration_bounds = array<i64: 1>, scalar_prefetch = 0 : i64, scratch_operands = 0 : i64, tpu.core_type = #tpu.core_type<tc>, window_params = [{transform_indices = @transform_0, window_bounds = array<i64: 16, 256>}, {pipeline_mode = #tpu.pipeline_mode<synchronous>, transform_indices = @transform_1, window_bounds = array<i64: 256, 128>}, {pipeline_mode = #tpu.pipeline_mode<synchronous>, transform_indices = @transform_2, window_bounds = array<i64: 1, 128>}, {pipeline_mode = #tpu.pipeline_mode<synchronous>, transform_indices = @transform_3, window_bounds = array<i64: 128, 128>}, {pipeline_mode = #tpu.pipeline_mode<synchronous>, transform_indices = @transform_4, window_bounds = array<i64: 1, 128>}, {pipeline_mode = #tpu.pipeline_mode<synchronous>, transform_indices = @transform_5, window_bounds = array<i64: 128, 128>}, {pipeline_mode = #tpu.pipeline_mode<synchronous>, transform_indices = @transform_6, window_bounds = array<i64: 1, 128>}, {pipeline_mode = #tpu.pipeline_mode<synchronous>, transform_indices = @transform_7, window_bounds = array<i64: 1, 8, 128>}, {pipeline_mode = #tpu.pipeline_mode<synchronous>, transform_indices = @transform_8, window_bounds = array<i64: 1, 8, 128>}, {transform_indices = @transform_9, window_bounds = array<i64: 2, 8, 128>}, {transform_indices = @transform_10, window_bounds = array<i64: 2, 8, 128>}, {transform_indices = @transform_11, window_bounds = array<i64: 2, 8, 128>}]} {
    %c0 = arith.constant 0 : index
    %c0_0 = arith.constant 0 : index
    %0 = vector.load %arg1[%c0, %c0_0] : memref<16x256xbf16, #tpu.memory_space<vmem>>, vector<16x256xbf16>
    %c0_1 = arith.constant 0 : index
    %c0_2 = arith.constant 0 : index
    %1 = vector.load %arg2[%c0_1, %c0_2] : memref<256x128xbf16, #tpu.memory_space<vmem>>, vector<256x128xbf16>
    %cst = arith.constant dense<0.000000e+00> : vector<16x128xf32>
    %2 = tpu.matmul %0, %1, %cst {dimension_numbers = #tpu.dot_dimension_numbers<[1], [0], [0], [1], [0, 0, 1, 1], [], []>} : vector<16x256xbf16>, vector<256x128xbf16>, vector<16x128xf32> -> vector<16x128xf32>
    %c0_3 = arith.constant 0 : index
    %c0_4 = arith.constant 0 : index
    %3 = vector.load %arg3[%c0_3, %c0_4] : memref<1x128xf32, #tpu.memory_space<vmem>>, vector<1x128xf32>
    %4 = vector.broadcast %3 : vector<1x128xf32> to vector<16x128xf32>
    %5 = arith.addf %2, %4 : vector<16x128xf32>
    %cst_5 = arith.constant 0.000000e+00 : f32
    %6 = vector.broadcast %cst_5 : f32 to vector<16x128xf32>
    %7 = arith.maximumf %5, %6 : vector<16x128xf32>
    %8 = arith.truncf %7 : vector<16x128xf32> to vector<16x128xbf16>
    %c0_6 = arith.constant 0 : index
    %c0_7 = arith.constant 0 : index
    %9 = vector.load %arg4[%c0_6, %c0_7] : memref<128x128xbf16, #tpu.memory_space<vmem>>, vector<128x128xbf16>
    %cst_8 = arith.constant dense<0.000000e+00> : vector<16x128xf32>
    %10 = tpu.matmul %8, %9, %cst_8 {dimension_numbers = #tpu.dot_dimension_numbers<[1], [0], [0], [1], [0, 0, 1, 1], [], []>} : vector<16x128xbf16>, vector<128x128xbf16>, vector<16x128xf32> -> vector<16x128xf32>
    %c0_9 = arith.constant 0 : index
    %c0_10 = arith.constant 0 : index
    %11 = vector.load %arg5[%c0_9, %c0_10] : memref<1x128xf32, #tpu.memory_space<vmem>>, vector<1x128xf32>
    %12 = vector.broadcast %11 : vector<1x128xf32> to vector<16x128xf32>
    %13 = arith.addf %10, %12 : vector<16x128xf32>
    %cst_11 = arith.constant 0.000000e+00 : f32
    %14 = vector.broadcast %cst_11 : f32 to vector<16x128xf32>
    %15 = arith.maximumf %13, %14 : vector<16x128xf32>
    %16 = arith.truncf %15 : vector<16x128xf32> to vector<16x128xbf16>
    %c0_12 = arith.constant 0 : index
    %c0_13 = arith.constant 0 : index
    %17 = vector.load %arg6[%c0_12, %c0_13] : memref<128x128xbf16, #tpu.memory_space<vmem>>, vector<128x128xbf16>
    %cst_14 = arith.constant dense<0.000000e+00> : vector<16x128xf32>
    %18 = tpu.matmul %16, %17, %cst_14 {dimension_numbers = #tpu.dot_dimension_numbers<[1], [0], [0], [1], [0, 0, 1, 1], [], []>} : vector<16x128xbf16>, vector<128x128xbf16>, vector<16x128xf32> -> vector<16x128xf32>
    %c0_15 = arith.constant 0 : index
    %c0_16 = arith.constant 0 : index
    %19 = vector.load %arg7[%c0_15, %c0_16] : memref<1x128xf32, #tpu.memory_space<vmem>>, vector<1x128xf32>
    %20 = vector.broadcast %19 : vector<1x128xf32> to vector<16x128xf32>
    %21 = arith.addf %18, %20 : vector<16x128xf32>
    %22 = vector.shape_cast %21 : vector<16x128xf32> to vector<2x8x128xf32>
    %c0_17 = arith.constant 0 : index
    %c0_18 = arith.constant 0 : index
    %c0_19 = arith.constant 0 : index
    %23 = vector.load %arg10[%c0_17, %c0_18, %c0_19] : memref<2x8x128xf32, #tpu.memory_space<vmem>>, vector<2x8x128xf32>
    tpu.vector_store %arg10[%c0_17, %c0_18, %c0_19], %22 {strides = array<i32>} : memref<2x8x128xf32, #tpu.memory_space<vmem>>, vector<2x8x128xf32>,
    %c0_20 = arith.constant 0 : index
    %c0_21 = arith.constant 0 : index
    %c0_22 = arith.constant 0 : index
    %24 = vector.load %arg8[%c0_20, %c0_21, %c0_22] : memref<1x8x128xf32, #tpu.memory_space<vmem>>, vector<1x8x128xf32>
    %25 = vector.extract_strided_slice %22 {offsets = [0, 1, 0], sizes = [2, 1, 128], strides = [1, 1, 1]} : vector<2x8x128xf32> to vector<2x1x128xf32>
    %26 = vector.broadcast %24 : vector<1x8x128xf32> to vector<2x8x128xf32>
    %27 = vector.broadcast %25 : vector<2x1x128xf32> to vector<2x8x128xf32>
    %28 = arith.mulf %26, %27 : vector<2x8x128xf32>
    %c0_23 = arith.constant 0 : index
    %c0_24 = arith.constant 0 : index
    %c0_25 = arith.constant 0 : index
    %29 = vector.load %arg9[%c0_23, %c0_24, %c0_25] : memref<1x8x128xf32, #tpu.memory_space<vmem>>, vector<1x8x128xf32>
    %30 = vector.extract_strided_slice %22 {offsets = [0, 0, 0], sizes = [2, 1, 128], strides = [1, 1, 1]} : vector<2x8x128xf32> to vector<2x1x128xf32>
    %31 = vector.broadcast %29 : vector<1x8x128xf32> to vector<2x8x128xf32>
    %32 = vector.broadcast %30 : vector<2x1x128xf32> to vector<2x8x128xf32>
    %33 = arith.mulf %31, %32 : vector<2x8x128xf32>
    %34 = arith.addf %28, %33 : vector<2x8x128xf32>
    %c0_26 = arith.constant 0 : index
    %c0_27 = arith.constant 0 : index
    %c0_28 = arith.constant 0 : index
    %35 = vector.load %arg11[%c0_26, %c0_27, %c0_28] : memref<2x8x128xf32, #tpu.memory_space<vmem>>, vector<2x8x128xf32>
    tpu.vector_store %arg11[%c0_26, %c0_27, %c0_28], %34 {strides = array<i32>} : memref<2x8x128xf32, #tpu.memory_space<vmem>>, vector<2x8x128xf32>,
    %c0_29 = arith.constant 0 : index
    %c0_30 = arith.constant 0 : index
    %c0_31 = arith.constant 0 : index
    %36 = vector.load %arg12[%c0_29, %c0_30, %c0_31] : memref<2x8x128xf32, #tpu.memory_space<vmem>>, vector<2x8x128xf32>
    tpu.vector_store %arg12[%c0_29, %c0_30, %c0_31], %22 {strides = array<i32>} : memref<2x8x128xf32, #tpu.memory_space<vmem>>, vector<2x8x128xf32>,
    %37 = vector.extract_strided_slice %22 {offsets = [0, 1, 0], sizes = [2, 6, 128], strides = [1, 1, 1]} : vector<2x8x128xf32> to vector<2x6x128xf32>
    %cst_32 = arith.constant 1.920000e+00 : f32
    %38 = vector.broadcast %cst_32 : f32 to vector<2x6x128xf32>
    %39 = arith.mulf %38, %37 : vector<2x6x128xf32>
    %40 = vector.extract_strided_slice %22 {offsets = [0, 0, 0], sizes = [2, 6, 128], strides = [1, 1, 1]} : vector<2x8x128xf32> to vector<2x6x128xf32>
    %cst_33 = arith.constant -0.959999978 : f32
    %41 = vector.broadcast %cst_33 : f32 to vector<2x6x128xf32>
    %42 = arith.mulf %41, %40 : vector<2x6x128xf32>
    %43 = arith.addf %39, %42 : vector<2x6x128xf32>
    %c0_34 = arith.constant 0 : index
    %c2 = arith.constant 2 : index
    %c0_35 = arith.constant 0 : index
    %44 = vector.load %arg12[%c0_34, %c2, %c0_35] : memref<2x8x128xf32, #tpu.memory_space<vmem>>, vector<2x6x128xf32>
    tpu.vector_store %arg12[%c0_34, %c2, %c0_35], %43 {strides = array<i32>} : memref<2x8x128xf32, #tpu.memory_space<vmem>>, vector<2x6x128xf32>,
    return
  }
  func.func @transform_0(%arg0: i32) -> (i32, i32) {
    %c0_i32 = arith.constant 0 : i32
    %c0_i32_0 = arith.constant 0 : i32
    return %arg0, %c0_i32 : i32, i32
  }
  func.func @transform_1(%arg0: i32) -> (i32, i32) {
    %c0_i32 = arith.constant 0 : i32
    %c0_i32_0 = arith.constant 0 : i32
    %c0_i32_1 = arith.constant 0 : i32
    return %c0_i32, %c0_i32_0 : i32, i32
  }
  func.func @transform_2(%arg0: i32) -> (i32, i32) {
    %c0_i32 = arith.constant 0 : i32
    %c0_i32_0 = arith.constant 0 : i32
    %c0_i32_1 = arith.constant 0 : i32
    return %c0_i32, %c0_i32_0 : i32, i32
  }
  func.func @transform_3(%arg0: i32) -> (i32, i32) {
    %c0_i32 = arith.constant 0 : i32
    %c0_i32_0 = arith.constant 0 : i32
    %c0_i32_1 = arith.constant 0 : i32
    return %c0_i32, %c0_i32_0 : i32, i32
  }
  func.func @transform_4(%arg0: i32) -> (i32, i32) {
    %c0_i32 = arith.constant 0 : i32
    %c0_i32_0 = arith.constant 0 : i32
    %c0_i32_1 = arith.constant 0 : i32
    return %c0_i32, %c0_i32_0 : i32, i32
  }
  func.func @transform_5(%arg0: i32) -> (i32, i32) {
    %c0_i32 = arith.constant 0 : i32
    %c0_i32_0 = arith.constant 0 : i32
    %c0_i32_1 = arith.constant 0 : i32
    return %c0_i32, %c0_i32_0 : i32, i32
  }
  func.func @transform_6(%arg0: i32) -> (i32, i32) {
    %c0_i32 = arith.constant 0 : i32
    %c0_i32_0 = arith.constant 0 : i32
    %c0_i32_1 = arith.constant 0 : i32
    return %c0_i32, %c0_i32_0 : i32, i32
  }
  func.func @transform_7(%arg0: i32) -> (i32, i32, i32) {
    %c0_i32 = arith.constant 0 : i32
    %c0_i32_0 = arith.constant 0 : i32
    %c0_i32_1 = arith.constant 0 : i32
    %c0_i32_2 = arith.constant 0 : i32
    return %c0_i32, %c0_i32_0, %c0_i32_1 : i32, i32, i32
  }
  func.func @transform_8(%arg0: i32) -> (i32, i32, i32) {
    %c0_i32 = arith.constant 0 : i32
    %c0_i32_0 = arith.constant 0 : i32
    %c0_i32_1 = arith.constant 0 : i32
    %c0_i32_2 = arith.constant 0 : i32
    return %c0_i32, %c0_i32_0, %c0_i32_1 : i32, i32, i32
  }
  func.func @transform_9(%arg0: i32) -> (i32, i32, i32) {
    %c0_i32 = arith.constant 0 : i32
    %c0_i32_0 = arith.constant 0 : i32
    %c0_i32_1 = arith.constant 0 : i32
    return %arg0, %c0_i32, %c0_i32_0 : i32, i32, i32
  }
  func.func @transform_10(%arg0: i32) -> (i32, i32, i32) {
    %c0_i32 = arith.constant 0 : i32
    %c0_i32_0 = arith.constant 0 : i32
    %c0_i32_1 = arith.constant 0 : i32
    return %arg0, %c0_i32, %c0_i32_0 : i32, i32, i32
  }
  func.func @transform_11(%arg0: i32) -> (i32, i32, i32) {
    %c0_i32 = arith.constant 0 : i32
    %c0_i32_0 = arith.constant 0 : i32
    %c0_i32_1 = arith.constant 0 : i32
    return %arg0, %c0_i32, %c0_i32_0 : i32, i32, i32
  }
}

</mosaic_0001>

<llo_original>
// kernel: end_phys_forward.1
$region0: #{end_phys_forward.1}
  #allocation0 [shape = 'u32[]', space=smem, size = 0x4, offset = 0x4, fixed_abs, tag = 'smem constant byte address 0x4 - core index']
  #allocation1 [shape = 'u32[144,128]{1,0:T(1,128)}', space=vmem, size = 0x12000, scoped, tag = 'internal scratch']
  %s0 = inlined_call_operand.vmem [shape: bf16[16,256], index: 0, kind: input, shape index: {}]
  %s1 = inlined_call_operand.vmem [shape: bf16[256,128], index: 1, kind: input, shape index: {}]
  %s2 = inlined_call_operand.vmem [shape: f32[1,128], index: 2, kind: input, shape index: {}]
  %s3 = inlined_call_operand.vmem [shape: bf16[128,128], index: 3, kind: input, shape index: {}]
  %s4 = inlined_call_operand.vmem [shape: f32[1,128], index: 4, kind: input, shape index: {}]
  %s5 = inlined_call_operand.vmem [shape: bf16[128,128], index: 5, kind: input, shape index: {}]
  %s6 = inlined_call_operand.vmem [shape: f32[1,128], index: 6, kind: input, shape index: {}]
  %s7 = inlined_call_operand.vmem [shape: f32[1,8,128], index: 7, kind: input, shape index: {}]
  %s8 = inlined_call_operand.vmem [shape: f32[1,8,128], index: 8, kind: input, shape index: {}]
  %s9 = inlined_call_operand.vmem [shape: f32[2,8,128], index: 9, kind: output, shape index: {0}]
  %s10 = inlined_call_operand.vmem [shape: f32[2,8,128], index: 10, kind: output, shape index: {1}]
  %s11 = inlined_call_operand.vmem [shape: f32[2,8,128], index: 11, kind: output, shape index: {2}]
  %12 = xla_tuple %s9, %s10, %s11
  %s13 = sld [smem:[#allocation0]]
  $region62: #{end_phys_forward.1} parent=0
    _
  %s15 = ssub.s32 1, %s13
  %s16 = scalar_select 0, %s15, %s13
  // Predicated region
  $region2: #{end_phys_forward.1} parent=0 // pred_check
    _
  $region3: #{end_phys_forward.1} parent=0 // pred_check_branch
    %18 = sbr.rel (0) target = $region5
  $region4: #{end_phys_forward.1} parent=0 // pred_region
    _
  $region5: #{end_phys_forward.1} parent=0 // pred_fallthru
    _
  // Predicated region
  $region6: #{end_phys_forward.1} parent=0 // pred_check
    _
  $region7: #{end_phys_forward.1} parent=0 // pred_check_branch
    %20 = sbr.rel (0) target = $region9
  $region8: #{end_phys_forward.1} parent=0 // pred_region
    _
  $region9: #{end_phys_forward.1} parent=0 // pred_fallthru
    _
  // Predicated region
  $region10: #{end_phys_forward.1} parent=0 // pred_check
    _
  $region11: #{end_phys_forward.1} parent=0 // pred_check_branch
    %22 = sbr.rel (0) target = $region13
  $region12: #{end_phys_forward.1} parent=0 // pred_region
    _
  $region13: #{end_phys_forward.1} parent=0 // pred_fallthru
    _
  // Predicated region
  $region14: #{end_phys_forward.1} parent=0 // pred_check
    _
  $region15: #{end_phys_forward.1} parent=0 // pred_check_branch
    %24 = sbr.rel (0) target = $region17
  $region16: #{end_phys_forward.1} parent=0 // pred_region
    _
  $region17: #{end_phys_forward.1} parent=0 // pred_fallthru
    _
  // Predicated region
  $region18: #{end_phys_forward.1} parent=0 // pred_check
    _
  $region19: #{end_phys_forward.1} parent=0 // pred_check_branch
    %26 = sbr.rel (0) target = $region21
  $region20: #{end_phys_forward.1} parent=0 // pred_region
    _
  $region21: #{end_phys_forward.1} parent=0 // pred_fallthru
    _
  // Predicated region
  $region22: #{end_phys_forward.1} parent=0 // pred_check
    _
  $region23: #{end_phys_forward.1} parent=0 // pred_check_branch
    %28 = sbr.rel (0) target = $region25
  $region24: #{end_phys_forward.1} parent=0 // pred_region
    _
  $region25: #{end_phys_forward.1} parent=0 // pred_fallthru
    _
  // Predicated region
  $region26: #{end_phys_forward.1} parent=0 // pred_check
    _
  $region27: #{end_phys_forward.1} parent=0 // pred_check_branch
    %30 = sbr.rel (0) target = $region29
  $region28: #{end_phys_forward.1} parent=0 // pred_region
    _
  $region29: #{end_phys_forward.1} parent=0 // pred_fallthru
    _
  // Predicated region
  $region30: #{end_phys_forward.1} parent=0 // pred_check
    _
  $region31: #{end_phys_forward.1} parent=0 // pred_check_branch
    %32 = sbr.rel (0) target = $region33
  $region32: #{end_phys_forward.1} parent=0 // pred_region
    _
  $region33: #{end_phys_forward.1} parent=0 // pred_fallthru
    _
  // Predicated region
  $region34: #{end_phys_forward.1} parent=0 // pred_check
    _
  $region35: #{end_phys_forward.1} parent=0 // pred_check_branch
    %34 = sbr.rel (0) target = $region37
  $region36: #{end_phys_forward.1} parent=0 // pred_region
    _
  $region37: #{end_phys_forward.1} parent=0 // pred_fallthru
    _
  %v36 = vld [vmem:[%s0] sm:$0xff]
  %v37 = vld [vmem:[%s0 + $0x8] sm:$0xff]
  %v38 = vld [vmem:[%s1] sm:$0xf]
  %v39 = vld [vmem:[%s1 + $0x4] sm:$0xf]
  %v40 = vld [vmem:[%s1 + $0x8] sm:$0xf]
  %v41 = vld [vmem:[%s1 + $0xc] sm:$0xf]
  %v42 = vld [vmem:[%s1 + $0x10] sm:$0xf]
  %v43 = vld [vmem:[%s1 + $0x14] sm:$0xf]
  %v44 = vld [vmem:[%s1 + $0x18] sm:$0xf]
  %v45 = vld [vmem:[%s1 + $0x1c] sm:$0xf]
  %v46 = vld [vmem:[%s1 + $0x20] sm:$0xf]
  %v47 = vld [vmem:[%s1 + $0x24] sm:$0xf]
  %v48 = vld [vmem:[%s1 + $0x28] sm:$0xf]
  %v49 = vld [vmem:[%s1 + $0x2c] sm:$0xf]
  %v50 = vld [vmem:[%s1 + $0x30] sm:$0xf]
  %v51 = vld [vmem:[%s1 + $0x34] sm:$0xf]
  %v52 = vld [vmem:[%s1 + $0x38] sm:$0xf]
  %v53 = vld [vmem:[%s1 + $0x3c] sm:$0xf]
  %v54 = vld [vmem:[%s1 + $0x40] sm:$0xf]
  %v55 = vld [vmem:[%s1 + $0x44] sm:$0xf]
  %v56 = vld [vmem:[%s1 + $0x48] sm:$0xf]
  %v57 = vld [vmem:[%s1 + $0x4c] sm:$0xf]
  %v58 = vld [vmem:[%s1 + $0x50] sm:$0xf]
  %v59 = vld [vmem:[%s1 + $0x54] sm:$0xf]
  %v60 = vld [vmem:[%s1 + $0x58] sm:$0xf]
  %v61 = vld [vmem:[%s1 + $0x5c] sm:$0xf]
  %v62 = vld [vmem:[%s1 + $0x60] sm:$0xf]
  %v63 = vld [vmem:[%s1 + $0x64] sm:$0xf]
  %v64 = vld [vmem:[%s1 + $0x68] sm:$0xf]
  %v65 = vld [vmem:[%s1 + $0x6c] sm:$0xf]
  %v66 = vld [vmem:[%s1 + $0x70] sm:$0xf]
  %v67 = vld [vmem:[%s1 + $0x74] sm:$0xf]
  %v68 = vld [vmem:[%s1 + $0x78] sm:$0xf]
  %v69 = vld [vmem:[%s1 + $0x7c] sm:$0xf]
  %v70 = vld [vmem:[%s2] sm:$0x1]
  %v72 = vlaneseq
  %v73 = vshrl.u32 %v72, 7
  %v74 = vsub.s32 0, %v73
  %v75 = vrot.slane %v70, %v74
  %v79 = vunpack.c.l.b16 %v36
  %v80 = vunpack.c.h.b16 %v36
  %v81 = vunpack.c.l.b16 %v37
  %v82 = vunpack.c.h.b16 %v37
  %v83 = vpack.c.b16 %v81, %v79
  %v84 = vpack.c.b16 %v82, %v80
  %v119 = vunpack.c.l.b16 %v38
  %v120 = vunpack.c.l.b16 %v39
  %v121 = vunpack.c.l.b16 %v40
  %v122 = vunpack.c.l.b16 %v41
  %v123 = vunpack.c.l.b16 %v42
  %v124 = vunpack.c.l.b16 %v43
  %v125 = vunpack.c.l.b16 %v44
  %v126 = vunpack.c.l.b16 %v45
  %v127 = vunpack.c.l.b16 %v46
  %v128 = vunpack.c.l.b16 %v47
  %v129 = vunpack.c.l.b16 %v48
  %v130 = vunpack.c.l.b16 %v49
  %v131 = vunpack.c.l.b16 %v50
  %v132 = vunpack.c.l.b16 %v51
  %v133 = vunpack.c.l.b16 %v52
  %v134 = vunpack.c.l.b16 %v53
  %v135 = vunpack.c.l.b16 %v54
  %v136 = vunpack.c.l.b16 %v55
  %v137 = vunpack.c.l.b16 %v56
  %v138 = vunpack.c.l.b16 %v57
  %v139 = vunpack.c.l.b16 %v58
  %v140 = vunpack.c.l.b16 %v59
  %v141 = vunpack.c.l.b16 %v60
  %v142 = vunpack.c.l.b16 %v61
  %v143 = vunpack.c.l.b16 %v62
  %v144 = vunpack.c.l.b16 %v63
  %v145 = vunpack.c.l.b16 %v64
  %v146 = vunpack.c.l.b16 %v65
  %v147 = vunpack.c.l.b16 %v66
  %v148 = vunpack.c.l.b16 %v67
  %v149 = vunpack.c.l.b16 %v68
  %v150 = vunpack.c.l.b16 %v69
  %v151 = vpack.c.b16 %v120, %v119
  %v152 = vpack.c.b16 %v122, %v121
  %v153 = vpack.c.b16 %v124, %v123
  %v154 = vpack.c.b16 %v126, %v125
  %v155 = vpack.c.b16 %v128, %v127
  %v156 = vpack.c.b16 %v130, %v129
  %v157 = vpack.c.b16 %v132, %v131
  %v158 = vpack.c.b16 %v134, %v133
  %v159 = vpack.c.b16 %v136, %v135
  %v160 = vpack.c.b16 %v138, %v137
  %v161 = vpack.c.b16 %v140, %v139
  %v162 = vpack.c.b16 %v142, %v141
  %v163 = vpack.c.b16 %v144, %v143
  %v164 = vpack.c.b16 %v146, %v145
  %v165 = vpack.c.b16 %v148, %v147
  %v166 = vpack.c.b16 %v150, %v149
  %183 = vmatprep.subr.bf16.mxu0 0
  %184 = vmatpush1.bf16.msra.mxu0 %v151
  %185 = vmatprep.subr.bf16.mxu0 0
  %186 = vmatpush1.bf16.msra.mxu0 %v152
  %187 = vmatprep.subr.bf16.mxu0 0
  %188 = vmatpush1.bf16.msra.mxu0 %v153
  %189 = vmatprep.subr.bf16.mxu0 0
  %190 = vmatpush1.bf16.msra.mxu0 %v154
  %191 = vmatprep.subr.bf16.mxu0 0
  %192 = vmatpush1.bf16.msra.mxu0 %v155
  %193 = vmatprep.subr.bf16.mxu0 0
  %194 = vmatpush1.bf16.msra.mxu0 %v156
  %195 = vmatprep.subr.bf16.mxu0 0
  %196 = vmatpush1.bf16.msra.mxu0 %v157
  %197 = vmatprep.subr.bf16.mxu0 0
  %198 = vmatpush1.bf16.msra.mxu0 %v158
  %199 = vmatprep.subr.bf16.mxu0 0
  %200 = vmatpush1.bf16.msra.mxu0 %v159
  %201 = vmatprep.subr.bf16.mxu0 0
  %202 = vmatpush1.bf16.msra.mxu0 %v160
  %203 = vmatprep.subr.bf16.mxu0 0
  %204 = vmatpush1.bf16.msra.mxu0 %v161
  %205 = vmatprep.subr.bf16.mxu0 0
  %206 = vmatpush1.bf16.msra.mxu0 %v162
  %207 = vmatprep.subr.bf16.mxu0 0
  %208 = vmatpush1.bf16.msra.mxu0 %v163
  %209 = vmatprep.subr.bf16.mxu0 0
  %210 = vmatpush1.bf16.msra.mxu0 %v164
  %211 = vmatprep.subr.bf16.mxu0 0
  %212 = vmatpush1.bf16.msra.mxu0 %v165
  %213 = vmatprep.subr.bf16.mxu0 0
  %214 = vmatpush1.bf16.msra.mxu0 %v166
  %215 = vmatprep.mubr.bf16.mxu0 %v84
  %216 = vmatmul.mubr.bf16.gmra.mrb[0].mxu0 %v83
  %v217 = vpop.f32.mrb[0].mxu0
  %v218 = vadd.f32 %v75, %v217
  %v219 = vpop.f32.mrb[0].mxu0
  %v220 = vpop.f32.mrb[0].mxu0
  %v221 = vadd.f32 %v75, %v220
  %v222 = vpop.f32.mrb[0].mxu0
  %223 = vdwg.mxu0
  %v224 = vmax.f32 %v218, 0.0
  %v225 = vmax.f32 %v221, 0.0
  %v226 = vpack.c.bf16 %v225, %v224
  %v227 = vld [vmem:[%s3] sm:$0xf]
  %v228 = vld [vmem:[%s3 + $0x4] sm:$0xf]
  %v229 = vld [vmem:[%s3 + $0x8] sm:$0xf]
  %v230 = vld [vmem:[%s3 + $0xc] sm:$0xf]
  %v231 = vld [vmem:[%s3 + $0x10] sm:$0xf]
  %v232 = vld [vmem:[%s3 + $0x14] sm:$0xf]
  %v233 = vld [vmem:[%s3 + $0x18] sm:$0xf]
  %v234 = vld [vmem:[%s3 + $0x1c] sm:$0xf]
  %v235 = vld [vmem:[%s3 + $0x20] sm:$0xf]
  %v236 = vld [vmem:[%s3 + $0x24] sm:$0xf]
  %v237 = vld [vmem:[%s3 + $0x28] sm:$0xf]
  %v238 = vld [vmem:[%s3 + $0x2c] sm:$0xf]
  %v239 = vld [vmem:[%s3 + $0x30] sm:$0xf]
  %v240 = vld [vmem:[%s3 + $0x34] sm:$0xf]
  %v241 = vld [vmem:[%s3 + $0x38] sm:$0xf]
  %v242 = vld [vmem:[%s3 + $0x3c] sm:$0xf]
  %v243 = vld [vmem:[%s4] sm:$0x1]
  %v245 = vlaneseq
  %v246 = vshrl.u32 %v245, 7
  %v247 = vsub.s32 0, %v246
  %v248 = vrot.slane %v243, %v247
  %v266 = vunpack.c.l.b16 %v227
  %v267 = vunpack.c.l.b16 %v228
  %v268 = vunpack.c.l.b16 %v229
  %v269 = vunpack.c.l.b16 %v230
  %v270 = vunpack.c.l.b16 %v231
  %v271 = vunpack.c.l.b16 %v232
  %v272 = vunpack.c.l.b16 %v233
  %v273 = vunpack.c.l.b16 %v234
  %v274 = vunpack.c.l.b16 %v235
  %v275 = vunpack.c.l.b16 %v236
  %v276 = vunpack.c.l.b16 %v237
  %v277 = vunpack.c.l.b16 %v238
  %v278 = vunpack.c.l.b16 %v239
  %v279 = vunpack.c.l.b16 %v240
  %v280 = vunpack.c.l.b16 %v241
  %v281 = vunpack.c.l.b16 %v242
  %v282 = vpack.c.b16 %v267, %v266
  %v283 = vpack.c.b16 %v269, %v268
  %v284 = vpack.c.b16 %v271, %v270
  %v285 = vpack.c.b16 %v273, %v272
  %v286 = vpack.c.b16 %v275, %v274
  %v287 = vpack.c.b16 %v277, %v276
  %v288 = vpack.c.b16 %v279, %v278
  %v289 = vpack.c.b16 %v281, %v280
  %298 = vmatprep.subr.bf16.mxu0 0
  %299 = vmatpush1.bf16.msra.mxu0 %v282
  %300 = vmatprep.subr.bf16.mxu0 0
  %301 = vmatpush1.bf16.msra.mxu0 %v283
  %302 = vmatprep.subr.bf16.mxu0 0
  %303 = vmatpush1.bf16.msra.mxu0 %v284
  %304 = vmatprep.subr.bf16.mxu0 0
  %305 = vmatpush1.bf16.msra.mxu0 %v285
  %306 = vmatprep.subr.bf16.mxu0 0
  %307 = vmatpush1.bf16.msra.mxu0 %v286
  %308 = vmatprep.subr.bf16.mxu0 0
  %309 = vmatpush1.bf16.msra.mxu0 %v287
  %310 = vmatprep.subr.bf16.mxu0 0
  %311 = vmatpush1.bf16.msra.mxu0 %v288
  %312 = vmatprep.subr.bf16.mxu0 0
  %313 = vmatpush1.bf16.msra.mxu0 %v289
  %314 = vmatprep.subr.bf16.mxu0 0
  %315 = vmatpush1.bf16.msra.mxu0 0
  %316 = vmatprep.subr.bf16.mxu0 0
  %317 = vmatpush1.bf16.msra.mxu0 0
  %318 = vmatprep.subr.bf16.mxu0 0
  %319 = vmatpush1.bf16.msra.mxu0 0
  %320 = vmatprep.subr.bf16.mxu0 0
  %321 = vmatpush1.bf16.msra.mxu0 0
  %322 = vmatprep.subr.bf16.mxu0 0
  %323 = vmatpush1.bf16.msra.mxu0 0
  %324 = vmatprep.subr.bf16.mxu0 0
  %325 = vmatpush1.bf16.msra.mxu0 0
  %326 = vmatprep.subr.bf16.mxu0 0
  %327 = vmatpush1.bf16.msra.mxu0 0
  %328 = vmatprep.subr.bf16.mxu0 0
  %329 = vmatpush1.bf16.msra.mxu0 0
  %330 = vmatprep.mubr.bf16.mxu0 0
  %331 = vmatmul.mubr.bf16.gmra.mrb[0].mxu0 %v226
  %v332 = vpop.f32.mrb[0].mxu0
  %v333 = vadd.f32 %v248, %v332
  %v334 = vpop.f32.mrb[0].mxu0
  %v335 = vpop.f32.mrb[0].mxu0
  %v336 = vadd.f32 %v248, %v335
  %v337 = vpop.f32.mrb[0].mxu0
  %338 = vdwg.mxu0
  %v339 = vmax.f32 %v333, 0.0
  %v340 = vmax.f32 %v336, 0.0
  %v341 = vpack.c.bf16 %v340, %v339
  %v342 = vld [vmem:[%s5] sm:$0xf]
  %v343 = vld [vmem:[%s5 + $0x4] sm:$0xf]
  %v344 = vld [vmem:[%s5 + $0x8] sm:$0xf]
  %v345 = vld [vmem:[%s5 + $0xc] sm:$0xf]
  %v346 = vld [vmem:[%s5 + $0x10] sm:$0xf]
  %v347 = vld [vmem:[%s5 + $0x14] sm:$0xf]
  %v348 = vld [vmem:[%s5 + $0x18] sm:$0xf]
  %v349 = vld [vmem:[%s5 + $0x1c] sm:$0xf]
  %v350 = vld [vmem:[%s5 + $0x20] sm:$0xf]
  %v351 = vld [vmem:[%s5 + $0x24] sm:$0xf]
  %v352 = vld [vmem:[%s5 + $0x28] sm:$0xf]
  %v353 = vld [vmem:[%s5 + $0x2c] sm:$0xf]
  %v354 = vld [vmem:[%s5 + $0x30] sm:$0xf]
  %v355 = vld [vmem:[%s5 + $0x34] sm:$0xf]
  %v356 = vld [vmem:[%s5 + $0x38] sm:$0xf]
  %v357 = vld [vmem:[%s5 + $0x3c] sm:$0xf]
  %v358 = vld [vmem:[%s6] sm:$0x1]
  %v360 = vlaneseq
  %v361 = vshrl.u32 %v360, 7
  %v362 = vsub.s32 0, %v361
  %v363 = vrot.slane %v358, %v362
  %v381 = vunpack.c.l.b16 %v342
  %v382 = vunpack.c.l.b16 %v343
  %v383 = vunpack.c.l.b16 %v344
  %v384 = vunpack.c.l.b16 %v345
  %v385 = vunpack.c.l.b16 %v346
  %v386 = vunpack.c.l.b16 %v347
  %v387 = vunpack.c.l.b16 %v348
  %v388 = vunpack.c.l.b16 %v349
  %v389 = vunpack.c.l.b16 %v350
  %v390 = vunpack.c.l.b16 %v351
  %v391 = vunpack.c.l.b16 %v352
  %v392 = vunpack.c.l.b16 %v353
  %v393 = vunpack.c.l.b16 %v354
  %v394 = vunpack.c.l.b16 %v355
  %v395 = vunpack.c.l.b16 %v356
  %v396 = vunpack.c.l.b16 %v357
  %v397 = vpack.c.b16 %v382, %v381
  %v398 = vpack.c.b16 %v384, %v383
  %v399 = vpack.c.b16 %v386, %v385
  %v400 = vpack.c.b16 %v388, %v387
  %v401 = vpack.c.b16 %v390, %v389
  %v402 = vpack.c.b16 %v392, %v391
  %v403 = vpack.c.b16 %v394, %v393
  %v404 = vpack.c.b16 %v396, %v395
  %413 = vmatprep.subr.bf16.mxu0 0
  %414 = vmatpush1.bf16.msra.mxu0 %v397
  %415 = vmatprep.subr.bf16.mxu0 0
  %416 = vmatpush1.bf16.msra.mxu0 %v398
  %417 = vmatprep.subr.bf16.mxu0 0
  %418 = vmatpush1.bf16.msra.mxu0 %v399
  %419 = vmatprep.subr.bf16.mxu0 0
  %420 = vmatpush1.bf16.msra.mxu0 %v400
  %421 = vmatprep.subr.bf16.mxu0 0
  %422 = vmatpush1.bf16.msra.mxu0 %v401
  %423 = vmatprep.subr.bf16.mxu0 0
  %424 = vmatpush1.bf16.msra.mxu0 %v402
  %425 = vmatprep.subr.bf16.mxu0 0
  %426 = vmatpush1.bf16.msra.mxu0 %v403
  %427 = vmatprep.subr.bf16.mxu0 0
  %428 = vmatpush1.bf16.msra.mxu0 %v404
  %429 = vmatprep.subr.bf16.mxu0 0
  %430 = vmatpush1.bf16.msra.mxu0 0
  %431 = vmatprep.subr.bf16.mxu0 0
  %432 = vmatpush1.bf16.msra.mxu0 0
  %433 = vmatprep.subr.bf16.mxu0 0
  %434 = vmatpush1.bf16.msra.mxu0 0
  %435 = vmatprep.subr.bf16.mxu0 0
  %436 = vmatpush1.bf16.msra.mxu0 0
  %437 = vmatprep.subr.bf16.mxu0 0
  %438 = vmatpush1.bf16.msra.mxu0 0
  %439 = vmatprep.subr.bf16.mxu0 0
  %440 = vmatpush1.bf16.msra.mxu0 0
  %441 = vmatprep.subr.bf16.mxu0 0
  %442 = vmatpush1.bf16.msra.mxu0 0
  %443 = vmatprep.subr.bf16.mxu0 0
  %444 = vmatpush1.bf16.msra.mxu0 0
  %445 = vmatprep.mubr.bf16.mxu0 0
  %446 = vmatmul.mubr.bf16.gmra.mrb[0].mxu0 %v341
  %v447 = vpop.f32.mrb[0].mxu0
  %v448 = vadd.f32 %v363, %v447
  %v449 = vpop.f32.mrb[0].mxu0
  %v450 = vpop.f32.mrb[0].mxu0
  %v451 = vadd.f32 %v363, %v450
  %v452 = vpop.f32.mrb[0].mxu0
  %453 = vdwg.mxu0
  %454 = vst [vmem:[%s9] sm:$0xff] %v448
  %455 = vst [vmem:[%s9 + $0x8] sm:$0xff] %v451
  %v456 = vld [vmem:[%s7] sm:$0xff]
  %v457 = vlaneseq
  %v458 = vshrl.u32 %v457, 7
  %v459 = vsub.s32 1, %v458
  %v460 = vrot.slane %v448, %v459
  %v461 = vlaneseq
  %v462 = vshrl.u32 %v461, 7
  %v463 = vsub.s32 1, %v462
  %v464 = vrot.slane %v451, %v463
  %v465 = vmul.f32 %v456, %v460
  %v466 = vmul.f32 %v456, %v464
  %v467 = vld [vmem:[%s8] sm:$0xff]
  %v468 = vlaneseq
  %v469 = vshrl.u32 %v468, 7
  %v470 = vsub.s32 0, %v469
  %v471 = vrot.slane %v448, %v470
  %v472 = vlaneseq
  %v473 = vshrl.u32 %v472, 7
  %v474 = vsub.s32 0, %v473
  %v475 = vrot.slane %v451, %v474
  %v476 = vmul.f32 %v467, %v471
  %v477 = vmul.f32 %v467, %v475
  %v478 = vadd.f32 %v465, %v476
  %v479 = vadd.f32 %v466, %v477
  %480 = vst [vmem:[%s10] sm:$0xff] %v478
  %481 = vst [vmem:[%s10 + $0x8] sm:$0xff] %v479
  %482 = vst [vmem:[%s11] sm:$0xff] %v448
  %483 = vst [vmem:[%s11 + $0x8] sm:$0xff] %v451
  %v484 = vmul.f32 %v448, 1.92
  %v485 = vmul.f32 %v451, 1.92
  %v486 = vmul.f32 %v448, -0.96
  %v487 = vmul.f32 %v451, -0.96
  %v490 = vrot.slane %v486, 7
  %v491 = vrot.slane %v487, 7
  %v494 = vadd.f32 %v484, %v490
  %v495 = vadd.f32 %v485, %v491
  %496 = vst [vmem:[%s11 + $0x1] sm:$0x7e] %v494
  %497 = vst [vmem:[%s11 + $0x9] sm:$0x7e] %v495
  // Predicated region
  $region38: #{end_phys_forward.1} parent=0 // pred_check
    _
  $region39: #{end_phys_forward.1} parent=0 // pred_check_branch
    %499 = sbr.rel (0) target = $region41
  $region40: #{end_phys_forward.1} parent=0 // pred_region
    _
  $region41: #{end_phys_forward.1} parent=0 // pred_fallthru
    _
  // Predicated region
  $region42: #{end_phys_forward.1} parent=0 // pred_check
    _
  $region43: #{end_phys_forward.1} parent=0 // pred_check_branch
    %501 = sbr.rel (0) target = $region45
  $region44: #{end_phys_forward.1} parent=0 // pred_region
    _
  $region45: #{end_phys_forward.1} parent=0 // pred_fallthru
    _
  // Predicated region
  $region46: #{end_phys_forward.1} parent=0 // pred_check
    _
  $region47: #{end_phys_forward.1} parent=0 // pred_check_branch
    %503 = sbr.rel (0) target = $region49
  $region48: #{end_phys_forward.1} parent=0 // pred_region
    _
  $region49: #{end_phys_forward.1} parent=0 // pred_fallthru
    _
  // Predicated region
  $region50: #{end_phys_forward.1} parent=0 // pred_check
    _
  $region51: #{end_phys_forward.1} parent=0 // pred_check_branch
    %505 = sbr.rel (0) target = $region53
  $region52: #{end_phys_forward.1} parent=0 // pred_region
    _
  $region53: #{end_phys_forward.1} parent=0 // pred_fallthru
    _
  // Predicated region
  $region54: #{end_phys_forward.1} parent=0 // pred_check
    _
  $region55: #{end_phys_forward.1} parent=0 // pred_check_branch
    %507 = sbr.rel (0) target = $region57
  $region56: #{end_phys_forward.1} parent=0 // pred_region
    _
  $region57: #{end_phys_forward.1} parent=0 // pred_fallthru
    _
  // Predicated region
  $region58: #{end_phys_forward.1} parent=0 // pred_check
    _
  $region59: #{end_phys_forward.1} parent=0 // pred_check_branch
    %509 = sbr.rel (0) target = $region61
  $region60: #{end_phys_forward.1} parent=0 // pred_region
    _
  $region61: #{end_phys_forward.1} parent=0 // pred_fallthru
    _

</llo_original>
